<compile_context>
chip_gen: v7x
topology: tpu7x:2x2x1
jax: 0.10.0
libtpu: 0.0.40
codegen_flags: <defaults>
</compile_context>

<pallas_src>
import functools

import jax
import jax.numpy as jnp
from jax.experimental import pallas as pl
from jax.experimental.pallas import tpu as pltpu

F_PAD = 128     # padded hidden-feature width (lane axis)
TM_MAX = 512    # max batch-tile rows (multiple of 8 for f32 sublanes)


def _mlp_kernel(x_ref, w_ref, b_ref, o_ref, *, depth, in_dim, out_dim):
    """Full MLP forward for one batch tile.

    x_ref: (TM, in_dim)           input tile (real columns only, no lane pad)
    w_ref: (depth, F_PAD, F_PAD)  stacked zero-padded weights, [in, out]
    b_ref: (depth, 1, F_PAD)      stacked zero-padded biases
    o_ref: (TM, out_dim)          output tile (real columns only)
    """
    x = x_ref[...]

    # Layer 0 as a VPU broadcast-FMA over the in_dim real input columns
    # (skips a (TM,128)x(128,128) matmul whose K axis is ~98% zero padding).
    h = b_ref[0]                                        # (1, F_PAD)
    for k in range(in_dim):
        h = h + x[:, k:k + 1] * w_ref[0, k:k + 1, :]    # (TM,1)*(1,F_PAD)

    if depth > 1:
        h = jnp.tanh(h)
        # Hidden layers 1..depth-2: Linear + tanh on the MXU.
        for i in range(1, depth - 1):
            h = jnp.tanh(
                jnp.dot(h, w_ref[i], preferred_element_type=jnp.float32)
                + b_ref[i])
        # Final layer: Linear only.
        h = (jnp.dot(h, w_ref[depth - 1], preferred_element_type=jnp.float32)
             + b_ref[depth - 1])

    # Only the first out_dim lanes are meaningful; write just those to HBM.
    o_ref[...] = h[:, :out_dim].astype(o_ref.dtype)


def init_params(key, layers):
    """Deterministic PyTorch-Linear-style init: U(-1/sqrt(fan_in), +1/sqrt(fan_in))."""
    depth = len(layers) - 1
    ws, bs = [], []
    for i in range(depth):
        fan_in, fan_out = layers[i], layers[i + 1]
        key, kw, kb = jax.random.split(key, 3)
        bound = 1.0 / jnp.sqrt(jnp.float32(fan_in))
        w = jax.random.uniform(kw, (fan_in, fan_out), jnp.float32, -bound, bound)
        b = jax.random.uniform(kb, (fan_out,), jnp.float32, -bound, bound)
        ws.append(w)
        bs.append(b)
    return ws, bs


def pack_params(ws, bs):
    """Zero-pad each layer to (F_PAD, F_PAD) / (1, F_PAD) and stack along depth."""
    depth = len(ws)
    w_stack = jnp.zeros((depth, F_PAD, F_PAD), jnp.float32)
    b_stack = jnp.zeros((depth, 1, F_PAD), jnp.float32)
    for i, (w, b) in enumerate(zip(ws, bs)):
        fi, fo = w.shape
        w_stack = w_stack.at[i, :fi, :fo].set(w)
        b_stack = b_stack.at[i, 0, :fo].set(b)
    return w_stack, b_stack


def _choose_tm(n):
    """Batch tile: as large as TM_MAX, but keep >=2 grid steps when possible
    so the 'parallel' batch axis can shard across both v7x TensorCores."""
    half = pl.cdiv(n, 2)
    tm = min(TM_MAX, ((half + 7) // 8) * 8)
    return max(8, tm)


def neural_net_forward(x, w_stack, b_stack, layers):
    """Pallas-backed forward pass of NeuralNet. x: [N, layers[0]] float32."""
    depth = len(layers) - 1
    n, in_dim = x.shape
    assert in_dim == layers[0]
    out_dim = layers[-1]

    tm = _choose_tm(n)
    n_pad = pl.cdiv(n, tm) * tm
    if n_pad != n:
        x = jnp.pad(x, ((0, n_pad - n), (0, 0)))

    kernel = functools.partial(_mlp_kernel, depth=depth, in_dim=in_dim,
                               out_dim=out_dim)

    flops_per_row = 2 * in_dim * F_PAD + 2 * (depth - 1) * F_PAD * F_PAD
    cost = pl.CostEstimate(
        flops=int(n_pad) * flops_per_row,
        transcendentals=int(n_pad) * (depth - 1) * F_PAD,
        bytes_accessed=4 * (int(n_pad) * in_dim
                            + depth * F_PAD * F_PAD
                            + depth * F_PAD
                            + int(n_pad) * out_dim),
    )

    out = pl.pallas_call(
        kernel,
        out_shape=jax.ShapeDtypeStruct((n_pad, out_dim), jnp.float32),
        grid_spec=pltpu.PrefetchScalarGridSpec(
            num_scalar_prefetch=0,
            grid=(n_pad // tm,),
            in_specs=[
                pl.BlockSpec((tm, in_dim), lambda i: (i, 0)),
                pl.BlockSpec((depth, F_PAD, F_PAD), lambda i: (0, 0, 0)),
                pl.BlockSpec((depth, 1, F_PAD), lambda i: (0, 0, 0)),
            ],
            out_specs=pl.BlockSpec((tm, out_dim), lambda i: (i, 0)),
        ),
        compiler_params=pltpu.CompilerParams(
            dimension_semantics=("parallel",)),
        cost_estimate=cost,
    )(x, w_stack, b_stack)

    return out[:n, :]


def neural_net_reference(x, ws, bs):
    """Pure-JAX reference for correctness checking."""
    h = x
    for i in range(len(ws) - 1):
        h = jnp.tanh(h @ ws[i] + bs[i])
    return h @ ws[-1] + bs[-1]


if __name__ == "__main__":
    # Typical PINN layer spec: 2 inputs (x, t), a few tanh hidden layers, 1 output.
    layers = [2, 32, 32, 32, 1]

    key = jax.random.PRNGKey(0)
    key, kx1, kx2 = jax.random.split(key, 3)
    ws, bs = init_params(key, layers)
    w_stack, b_stack = pack_params(ws, bs)

    # Small case (grid of 2 small tiles).
    N1 = 64
    x1 = jax.random.normal(kx1, (N1, layers[0]), jnp.float32)
    out1 = jax.block_until_ready(neural_net_forward(x1, w_stack, b_stack, layers))
    ref1 = neural_net_reference(x1, ws, bs)
    assert out1.shape == (N1, layers[-1])
    assert jnp.allclose(out1, ref1, atol=1e-5, rtol=1e-5), "mismatch vs reference (N=64)"

    # Larger, non-tile-aligned case (exercises row padding + bigger batch tile).
    N2 = 600
    x2 = jax.random.normal(kx2, (N2, layers[0]), jnp.float32)
    out2 = jax.block_until_ready(neural_net_forward(x2, w_stack, b_stack, layers))
    ref2 = neural_net_reference(x2, ws, bs)
    assert out2.shape == (N2, layers[-1])
    assert jnp.allclose(out2, ref2, atol=1e-5, rtol=1e-5), "mismatch vs reference (N=600)"

    print("KERNEL_OK")
</pallas_src>

<mosaic_0001>
module attributes {stable_mosaic.version = 11 : i64} {
  func.func @_mlp_kernel(%arg0: i32, %arg1: memref<32x2xf32, #tpu.memory_space<vmem>>, %arg2: memref<4x128x128xf32, #tpu.memory_space<vmem>>, %arg3: memref<4x1x128xf32, #tpu.memory_space<vmem>>, %arg4: memref<32x1xf32, #tpu.memory_space<vmem>>) attributes {dimension_semantics = [#tpu.dimension_semantics<parallel>], iteration_bounds = array<i64: 2>, scalar_prefetch = 0 : i64, scratch_operands = 0 : i64, tpu.core_type = #tpu.core_type<tc>, window_params = [{transform_indices = @transform_0, window_bounds = array<i64: 32, 2>}, {pipeline_mode = #tpu.pipeline_mode<synchronous>, transform_indices = @transform_1, window_bounds = array<i64: 4, 128, 128>}, {pipeline_mode = #tpu.pipeline_mode<synchronous>, transform_indices = @transform_2, window_bounds = array<i64: 4, 1, 128>}, {transform_indices = @transform_3, window_bounds = array<i64: 32, 1>}]} {
    %c0 = arith.constant 0 : index
    %c0_0 = arith.constant 0 : index
    %0 = vector.load %arg1[%c0, %c0_0] : memref<32x2xf32, #tpu.memory_space<vmem>>, vector<32x2xf32>
    %c0_1 = arith.constant 0 : index
    %c0_2 = arith.constant 0 : index
    %c0_3 = arith.constant 0 : index
    %1 = vector.load %arg3[%c0_1, %c0_2, %c0_3] : memref<4x1x128xf32, #tpu.memory_space<vmem>>, vector<1x1x128xf32>
    %2 = vector.shape_cast %1 : vector<1x1x128xf32> to vector<1x128xf32>
    %3 = vector.extract_strided_slice %0 {offsets = [0, 0], sizes = [32, 1], strides = [1, 1]} : vector<32x2xf32> to vector<32x1xf32>
    %c0_4 = arith.constant 0 : index
    %c0_5 = arith.constant 0 : index
    %c0_6 = arith.constant 0 : index
    %4 = vector.load %arg2[%c0_4, %c0_5, %c0_6] : memref<4x128x128xf32, #tpu.memory_space<vmem>>, vector<1x1x128xf32>
    %5 = vector.shape_cast %4 : vector<1x1x128xf32> to vector<1x128xf32>
    %6 = vector.broadcast %3 : vector<32x1xf32> to vector<32x128xf32>
    %7 = vector.broadcast %5 : vector<1x128xf32> to vector<32x128xf32>
    %8 = arith.mulf %6, %7 : vector<32x128xf32>
    %9 = vector.broadcast %2 : vector<1x128xf32> to vector<32x128xf32>
    %10 = arith.addf %9, %8 : vector<32x128xf32>
    %11 = vector.extract_strided_slice %0 {offsets = [0, 1], sizes = [32, 1], strides = [1, 1]} : vector<32x2xf32> to vector<32x1xf32>
    %c0_7 = arith.constant 0 : index
    %c1 = arith.constant 1 : index
    %c0_8 = arith.constant 0 : index
    %12 = vector.load %arg2[%c0_7, %c1, %c0_8] : memref<4x128x128xf32, #tpu.memory_space<vmem>>, vector<1x1x128xf32>
    %13 = vector.shape_cast %12 : vector<1x1x128xf32> to vector<1x128xf32>
    %14 = vector.broadcast %11 : vector<32x1xf32> to vector<32x128xf32>
    %15 = vector.broadcast %13 : vector<1x128xf32> to vector<32x128xf32>
    %16 = arith.mulf %14, %15 : vector<32x128xf32>
    %17 = arith.addf %10, %16 : vector<32x128xf32>
    %18 = math.tanh %17 : vector<32x128xf32>
    %c1_9 = arith.constant 1 : index
    %c0_10 = arith.constant 0 : index
    %c0_11 = arith.constant 0 : index
    %19 = vector.load %arg2[%c1_9, %c0_10, %c0_11] : memref<4x128x128xf32, #tpu.memory_space<vmem>>, vector<1x128x128xf32>
    %20 = vector.shape_cast %19 : vector<1x128x128xf32> to vector<128x128xf32>
    %cst = arith.constant dense<0.000000e+00> : vector<32x128xf32>
    %21 = tpu.matmul %18, %20, %cst {dimension_numbers = #tpu.dot_dimension_numbers<[1], [0], [0], [1], [0, 0, 1, 1], [], []>} : vector<32x128xf32>, vector<128x128xf32>, vector<32x128xf32> -> vector<32x128xf32>
    %c1_12 = arith.constant 1 : index
    %c0_13 = arith.constant 0 : index
    %c0_14 = arith.constant 0 : index
    %22 = vector.load %arg3[%c1_12, %c0_13, %c0_14] : memref<4x1x128xf32, #tpu.memory_space<vmem>>, vector<1x1x128xf32>
    %23 = vector.shape_cast %22 : vector<1x1x128xf32> to vector<1x128xf32>
    %24 = vector.broadcast %23 : vector<1x128xf32> to vector<32x128xf32>
    %25 = arith.addf %21, %24 : vector<32x128xf32>
    %26 = math.tanh %25 : vector<32x128xf32>
    %c2 = arith.constant 2 : index
    %c0_15 = arith.constant 0 : index
    %c0_16 = arith.constant 0 : index
    %27 = vector.load %arg2[%c2, %c0_15, %c0_16] : memref<4x128x128xf32, #tpu.memory_space<vmem>>, vector<1x128x128xf32>
    %28 = vector.shape_cast %27 : vector<1x128x128xf32> to vector<128x128xf32>
    %cst_17 = arith.constant dense<0.000000e+00> : vector<32x128xf32>
    %29 = tpu.matmul %26, %28, %cst_17 {dimension_numbers = #tpu.dot_dimension_numbers<[1], [0], [0], [1], [0, 0, 1, 1], [], []>} : vector<32x128xf32>, vector<128x128xf32>, vector<32x128xf32> -> vector<32x128xf32>
    %c2_18 = arith.constant 2 : index
    %c0_19 = arith.constant 0 : index
    %c0_20 = arith.constant 0 : index
    %30 = vector.load %arg3[%c2_18, %c0_19, %c0_20] : memref<4x1x128xf32, #tpu.memory_space<vmem>>, vector<1x1x128xf32>
    %31 = vector.shape_cast %30 : vector<1x1x128xf32> to vector<1x128xf32>
    %32 = vector.broadcast %31 : vector<1x128xf32> to vector<32x128xf32>
    %33 = arith.addf %29, %32 : vector<32x128xf32>
    %34 = math.tanh %33 : vector<32x128xf32>
    %c3 = arith.constant 3 : index
    %c0_21 = arith.constant 0 : index
    %c0_22 = arith.constant 0 : index
    %35 = vector.load %arg2[%c3, %c0_21, %c0_22] : memref<4x128x128xf32, #tpu.memory_space<vmem>>, vector<1x128x128xf32>
    %36 = vector.shape_cast %35 : vector<1x128x128xf32> to vector<128x128xf32>
    %cst_23 = arith.constant dense<0.000000e+00> : vector<32x128xf32>
    %37 = tpu.matmul %34, %36, %cst_23 {dimension_numbers = #tpu.dot_dimension_numbers<[1], [0], [0], [1], [0, 0, 1, 1], [], []>} : vector<32x128xf32>, vector<128x128xf32>, vector<32x128xf32> -> vector<32x128xf32>
    %c3_24 = arith.constant 3 : index
    %c0_25 = arith.constant 0 : index
    %c0_26 = arith.constant 0 : index
    %38 = vector.load %arg3[%c3_24, %c0_25, %c0_26] : memref<4x1x128xf32, #tpu.memory_space<vmem>>, vector<1x1x128xf32>
    %39 = vector.shape_cast %38 : vector<1x1x128xf32> to vector<1x128xf32>
    %40 = vector.broadcast %39 : vector<1x128xf32> to vector<32x128xf32>
    %41 = arith.addf %37, %40 : vector<32x128xf32>
    %42 = vector.extract_strided_slice %41 {offsets = [0, 0], sizes = [32, 1], strides = [1, 1]} : vector<32x128xf32> to vector<32x1xf32>
    %c0_27 = arith.constant 0 : index
    %c0_28 = arith.constant 0 : index
    %43 = vector.load %arg4[%c0_27, %c0_28] : memref<32x1xf32, #tpu.memory_space<vmem>>, vector<32x1xf32>
    tpu.vector_store %arg4[%c0_27, %c0_28], %42 {strides = array<i32>} : memref<32x1xf32, #tpu.memory_space<vmem>>, vector<32x1xf32>,
    return
  }
  func.func @transform_0(%arg0: i32) -> (i32, i32) {
    %c0_i32 = arith.constant 0 : i32
    %c0_i32_0 = arith.constant 0 : i32
    return %arg0, %c0_i32 : i32, i32
  }
  func.func @transform_1(%arg0: i32) -> (i32, i32, i32) {
    %c0_i32 = arith.constant 0 : i32
    %c0_i32_0 = arith.constant 0 : i32
    %c0_i32_1 = arith.constant 0 : i32
    %c0_i32_2 = arith.constant 0 : i32
    return %c0_i32, %c0_i32_0, %c0_i32_1 : i32, i32, i32
  }
  func.func @transform_2(%arg0: i32) -> (i32, i32, i32) {
    %c0_i32 = arith.constant 0 : i32
    %c0_i32_0 = arith.constant 0 : i32
    %c0_i32_1 = arith.constant 0 : i32
    %c0_i32_2 = arith.constant 0 : i32
    return %c0_i32, %c0_i32_0, %c0_i32_1 : i32, i32, i32
  }
  func.func @transform_3(%arg0: i32) -> (i32, i32) {
    %c0_i32 = arith.constant 0 : i32
    %c0_i32_0 = arith.constant 0 : i32
    return %arg0, %c0_i32 : i32, i32
  }
}

</mosaic_0001>

<llo_original>
// kernel: tpu_custom_call.1
$region0: #{tpu_custom_call.1}
  #allocation0 [shape = 'u32[]', space=smem, size = 0x4, offset = 0x4, fixed_abs, tag = 'smem constant byte address 0x4 - core index']
  #allocation1 [shape = 'u32[144,128]{1,0:T(1,128)}', space=vmem, size = 0x12000, scoped, tag = 'internal scratch']
  %s0 = inlined_call_operand.vmem [shape: f32[64,2], index: 0, kind: input, shape index: {}]
  %s1 = inlined_call_operand.hbm [shape: f32[4,128,128], index: 1, kind: input, shape index: {}]
  %s2 = inlined_call_operand.vmem [shape: f32[4,1,128], index: 2, kind: input, shape index: {}]
  %s3 = inlined_call_operand.vmem [shape: f32[64,1], index: 3, kind: output, shape index: {}]
  %s4 = sld [smem:[#allocation0]]
  $region49: #{tpu_custom_call.1} parent=0
    _
  %s6 = ssub.s32 1, %s4
  %s7 = scalar_select 0, %s6, %s4
  $region1: #{tpu_custom_call.1} parent=0
    #allocation2 [shape = 'u8[262144]{0}', space=vmem, size = 0x40000, scoped, tag = 'input window, operand 1, single buffered']
    #allocation3 [shape = 's32[2]{0}', space=sflag, size = 0x8, scoped, tag = 'scoped memory for tpu_custom_call.1']
    %8 = vsyncpa [#allocation3], 0
    loop: start=0, step=1, limit=4
    $region2: #{tpu_custom_call.1} parent=1 // loop_pre_header
      _
    $region3: #{tpu_custom_call.1} parent=1 // loop_header
      %s10 = sphi 0, %s14
      %p11 = scmp.ge.s32.totalorder %s10, 4
      %s20 = sphi 0, %s22
      %s23 = sphi 0, %s20
      %s24 = sphi 0, %s23
      %s40 = sphi 0, %s24
      %s44 = sphi 0, %s44
      %s46 = sphi 0, %s44
      %s47 = sphi 0, %s46
      %s61 = sphi 0, %s47
      %s65 = sphi 0, %s65
      %s67 = sphi 0, %s65
      %s68 = sphi 0, %s67
      %s82 = sphi 0, %s68
      %s88 = sphi 0, %s90
      %s91 = sphi 0, %s88
      %s92 = sphi 0, %s91
      %s108 = sphi 0, %s92
    $region4: #{tpu_custom_call.1} parent=1 // loop_header_branch
      %13 = sbr.rel (%p11) target = $region8
    $region5: #{tpu_custom_call.1} parent=1 // loop_body
      %s15 = ssub.s32 %s10, 1
      %s16 = ssub.s32 %s10, 2
      %s17 = sadd.s32 %s10, 1
      %s18 = ssub.s32 %s10, %s17
      %p19 = scmp.eq.s32.totalorder %s18, 0
      %s21 = sadd.s32 %s20, 1
      %s22 = scalar_select %p19, %s20, %s21
      %p25 = pneg %p19
      %p26 = scmp.eq.s32.totalorder %s10, 1
      %p27 = por %p25, %p26
      %p28 = scmp.ne.s32.totalorder %s20, %s23
      %p29 = scmp.eq.s32.totalorder %s10, 0
      %p30 = por %p28, %p29
      %p31 = scmp.ne.s32.totalorder %s20, %s23
      %p32 = scmp.eq.s32.totalorder %s15, 1
      %p33 = por %p31, %p32
      %p34 = scmp.ne.s32.totalorder %s23, %s24
      %p35 = scmp.eq.s32.totalorder %s15, 0
      %p36 = por %p34, %p35
      %p37 = scmp.ne.s32.totalorder %s23, %s24
      %p38 = scmp.eq.s32.totalorder %s16, 1
      %p39 = por %p37, %p38
      %p41 = scmp.ne.s32.totalorder %s24, %s40
      %p42 = scmp.eq.s32.totalorder %s16, 0
      %p43 = por %p41, %p42
      %s45 = sadd.s32 %s44, 1
      %p48 = scmp.eq.s32.totalorder %s10, 1
      %p49 = scmp.ne.s32.totalorder %s44, %s46
      %p50 = scmp.eq.s32.totalorder %s10, 0
      %p51 = por %p49, %p50
      %p52 = scmp.ne.s32.totalorder %s44, %s46
      %p53 = scmp.eq.s32.totalorder %s15, 1
      %p54 = por %p52, %p53
      %p55 = scmp.ne.s32.totalorder %s46, %s47
      %p56 = scmp.eq.s32.totalorder %s15, 0
      %p57 = por %p55, %p56
      %p58 = scmp.ne.s32.totalorder %s46, %s47
      %p59 = scmp.eq.s32.totalorder %s16, 1
      %p60 = por %p58, %p59
      %p62 = scmp.ne.s32.totalorder %s47, %s61
      %p63 = scmp.eq.s32.totalorder %s16, 0
      %p64 = por %p62, %p63
      %s66 = sadd.s32 %s65, 1
      %p69 = scmp.eq.s32.totalorder %s10, 1
      %p70 = scmp.ne.s32.totalorder %s65, %s67
      %p71 = scmp.eq.s32.totalorder %s10, 0
      %p72 = por %p70, %p71
      %p73 = scmp.ne.s32.totalorder %s65, %s67
      %p74 = scmp.eq.s32.totalorder %s15, 1
      %p75 = por %p73, %p74
      %p76 = scmp.ne.s32.totalorder %s67, %s68
      %p77 = scmp.eq.s32.totalorder %s15, 0
      %p78 = por %p76, %p77
      %p79 = scmp.ne.s32.totalorder %s67, %s68
      %p80 = scmp.eq.s32.totalorder %s16, 1
      %p81 = por %p79, %p80
      %p83 = scmp.ne.s32.totalorder %s68, %s82
      %p84 = scmp.eq.s32.totalorder %s16, 0
      %p85 = por %p83, %p84
      %s86 = ssub.s32 %s10, %s17
      %p87 = scmp.eq.s32.totalorder %s86, 0
      %s89 = sadd.s32 %s88, 1
      %s90 = scalar_select %p87, %s88, %s89
      %p93 = pneg %p87
      %p94 = scmp.eq.s32.totalorder %s10, 1
      %p95 = por %p93, %p94
      %p96 = scmp.ne.s32.totalorder %s88, %s91
      %p97 = scmp.eq.s32.totalorder %s10, 0
      %p98 = por %p96, %p97
      %p99 = scmp.ne.s32.totalorder %s88, %s91
      %p100 = scmp.eq.s32.totalorder %s15, 1
      %p101 = por %p99, %p100
      %p102 = scmp.ne.s32.totalorder %s91, %s92
      %p103 = scmp.eq.s32.totalorder %s15, 0
      %p104 = por %p102, %p103
      %p105 = scmp.ne.s32.totalorder %s91, %s92
      %p106 = scmp.eq.s32.totalorder %s16, 1
      %p107 = por %p105, %p106
      %p109 = scmp.ne.s32.totalorder %s92, %s108
      %p110 = scmp.eq.s32.totalorder %s16, 0
      %p111 = por %p109, %p110
      %p112 = scmp.le.s32.totalorder 1, %s10
      %p113 = scmp.lt.s32.totalorder %s10, 3
      %p114 = pnand %p112, %p113
      %p115 = pneg %p114
      // Predicated region
      $region9: #{tpu_custom_call.1} parent=5 // pred_check
        _
      $region10: #{tpu_custom_call.1} parent=5 // pred_check_branch
        %117 = sbr.rel (%p114) target = $region12
      $region11: #{tpu_custom_call.1} parent=5 // pred_region
        %s118 = ssub.s32 %s10, 1
        // Predicated region
        $region13: #{tpu_custom_call.1} parent=11 // pred_check
          %p119 = pneg %p57
        $region14: #{tpu_custom_call.1} parent=11 // pred_check_branch
          %121 = sbr.rel (%p119) target = $region16
        $region15: #{tpu_custom_call.1} parent=11 // pred_region
          %s123 = ssub.s32 8192, 8192
          %124 = vsyncadd [#allocation3], %s123
          %s125 = sshll.u32 [#allocation2], 4
          %s126 = int_to_ptr.vmem [resolvable:$true] %s125
          %131 = dma.hbm_to_vmem [thread:$0]  %s1, 8192, %s126, [#allocation3], 128, 128, 8
        $region16: #{tpu_custom_call.1} parent=11 // pred_fallthru
          _
        // Predicated region
        $region17: #{tpu_custom_call.1} parent=11 // pred_check
          %p132 = pneg %p78
        $region18: #{tpu_custom_call.1} parent=11 // pred_check_branch
          %134 = sbr.rel (%p132) target = $region20
        $region19: #{tpu_custom_call.1} parent=11 // pred_region
          _
        $region20: #{tpu_custom_call.1} parent=11 // pred_fallthru
          _
      $region12: #{tpu_custom_call.1} parent=5 // pred_fallthru
        _
      %p135 = scmp.lt.s32.totalorder %s10, 2
      // Predicated region
      $region21: #{tpu_custom_call.1} parent=5 // pred_check
        %p136 = pneg %p135
      $region22: #{tpu_custom_call.1} parent=5 // pred_check_branch
        %138 = sbr.rel (%p136) target = $region24
      $region23: #{tpu_custom_call.1} parent=5 // pred_region
        // Predicated region
        $region25: #{tpu_custom_call.1} parent=23 // pred_check
          %p139 = pneg %p30
        $region26: #{tpu_custom_call.1} parent=23 // pred_check_branch
          %141 = sbr.rel (%p139) target = $region28
        $region27: #{tpu_custom_call.1} parent=23 // pred_region
          %s142 = smul.u32 4, %s10
          %p143 = scmp.lt.s32.totalorder %s142, 7
          %s144 = scalar_select %p143, %s142, 7
          %s145 = smul.addr %s144, 8
          %s146 = scalar_lea.vmem %s0, %s145
          %s147 = smul.u32 4, %s10
        $region28: #{tpu_custom_call.1} parent=23 // pred_fallthru
          _
      $region24: #{tpu_custom_call.1} parent=5 // pred_fallthru
        _
      %p148 = scmp.le.s32.totalorder 1, %s10
      %p149 = scmp.lt.s32.totalorder %s10, 3
      %p150 = pnand %p148, %p149
      %p151 = pneg %p150
      // Predicated region
      $region29: #{tpu_custom_call.1} parent=5 // pred_check
        _
      $region30: #{tpu_custom_call.1} parent=5 // pred_check_branch
        %153 = sbr.rel (%p150) target = $region32
      $region31: #{tpu_custom_call.1} parent=5 // pred_region
        %s154 = ssub.s32 %s10, 1
        // Predicated region
        $region33: #{tpu_custom_call.1} parent=31 // pred_check
          %p155 = pneg %p57
        $region34: #{tpu_custom_call.1} parent=31 // pred_check_branch
          %157 = sbr.rel (%p155) target = $region36
        $region35: #{tpu_custom_call.1} parent=31 // pred_region
          %158 = dma.done [#allocation3], 8192
        $region36: #{tpu_custom_call.1} parent=31 // pred_fallthru
          _
        %s159 = smul.u32 4, %s15
        %p160 = scmp.lt.s32.totalorder %s159, 7
        %s161 = scalar_select %p160, %s159, 7
        %s162 = smul.addr %s161, 8
        %s163 = scalar_lea.vmem %s0, %s162
        %p164 = pneg %p36
        %p165 = pneg %p33
        %p166 = pneg %p57
        %p167 = pneg %p54
        %p168 = pneg %p78
        %p169 = pneg %p75
        %p170 = pneg %p104
        %p171 = pneg %p101
        %s172 = smul.u32 4, %s15
        %p173 = scmp.lt.s32.totalorder %s172, 7
        %s174 = scalar_select %p173, %s172, 7
        %s175 = smul.addr %s174, 8
        %s176 = scalar_lea.vmem %s3, %s175
        %s177 = smul.u32 4, %s15
        %p178 = scmp.lt.s32.totalorder %s177, 7
        %s179 = scalar_select %p178, %s177, 7
        %s180 = smul.addr %s179, 8
        %s181 = scalar_lea.vmem %s0, %s180
        %s182 = smul.u32 4, %s15
        %s183 = smul.u32 4, %s15
        %p184 = scmp.lt.s32.totalorder %s183, 7
        %s185 = scalar_select %p184, %s183, 7
        %s186 = smul.addr %s185, 8
        %s187 = scalar_lea.vmem %s3, %s186
        %s188 = smul.u32 4, %s15
        %v189 = vld [vmem:[%s181] sm:$0xff]
        %v190 = vld [vmem:[%s181 + $0x8] sm:$0xff]
        %v191 = vld [vmem:[%s181 + $0x10] sm:$0xff]
        %v192 = vld [vmem:[%s181 + $0x18] sm:$0xff]
        %v193 = vld [vmem:[%s2] sm:$0x1]
        %v194 = vld [vmem:[#allocation2] sm:$0x1]
        %196 = vset.pattern.permute.xlu0 0
        %197 = vperm.xlu0 %196, %v189
        %v198 = vpop.permute.xlu0 %197
        %201 = vset.pattern.permute.xlu0 0
        %202 = vperm.xlu0 %201, %v190
        %v203 = vpop.permute.xlu0 %202
        %206 = vset.pattern.permute.xlu0 0
        %207 = vperm.xlu0 %206, %v191
        %v208 = vpop.permute.xlu0 %207
        %211 = vset.pattern.permute.xlu0 0
        %212 = vperm.xlu0 %211, %v192
        %v213 = vpop.permute.xlu0 %212
        %v215 = vlaneseq
        %v216 = vshrl.u32 %v215, 7
        %v217 = vsub.s32 0, %v216
        %v218 = vrot.slane %v194, %v217
        %v219 = vmul.f32 %v198, %v218
        %v220 = vmul.f32 %v203, %v218
        %v221 = vmul.f32 %v208, %v218
        %v222 = vmul.f32 %v213, %v218
        %v224 = vlaneseq
        %v225 = vshrl.u32 %v224, 7
        %v226 = vsub.s32 0, %v225
        %v227 = vrot.slane %v193, %v226
        %v229 = vadd.f32 %v227, %v219
        %v230 = vadd.f32 %v227, %v220
        %v231 = vadd.f32 %v227, %v221
        %v232 = vadd.f32 %v227, %v222
        %v233 = vld [vmem:[#allocation2 + $0x1] sm:$0x1]
        %234 = vset.pattern.permute.xlu0 1
        %235 = vperm.xlu0 %234, %v189
        %v236 = vpop.permute.xlu0 %235
        %238 = vset.pattern.permute.xlu0 1
        %239 = vperm.xlu0 %238, %v190
        %v240 = vpop.permute.xlu0 %239
        %242 = vset.pattern.permute.xlu0 1
        %243 = vperm.xlu0 %242, %v191
        %v244 = vpop.permute.xlu0 %243
        %246 = vset.pattern.permute.xlu0 1
        %247 = vperm.xlu0 %246, %v192
        %v248 = vpop.permute.xlu0 %247
        %v250 = vlaneseq
        %v251 = vshrl.u32 %v250, 7
        %v252 = vsub.s32 0, %v251
        %v253 = vrot.slane %v233, %v252
        %v254 = vmul.f32 %v236, %v253
        %v255 = vmul.f32 %v240, %v253
        %v256 = vmul.f32 %v244, %v253
        %v257 = vmul.f32 %v248, %v253
        %v258 = vadd.f32 %v229, %v254
        %v259 = vadd.f32 %v230, %v255
        %v260 = vadd.f32 %v231, %v256
        %v261 = vadd.f32 %v232, %v257
        %v262 = vtanh.pop %v258
        %v263 = vtanh.pop %v259
        %v264 = vtanh.pop %v260
        %v265 = vtanh.pop %v261
        %s266 = scalar_lea.vmem [#allocation2], 128
        %v267 = vld [vmem:[%s266] sm:$0xff]
        %v268 = vld [vmem:[%s266 + $0x8] sm:$0xff]
        %v269 = vld [vmem:[%s266 + $0x10] sm:$0xff]
        %v270 = vld [vmem:[%s266 + $0x18] sm:$0xff]
        %v271 = vld [vmem:[%s266 + $0x20] sm:$0xff]
        %v272 = vld [vmem:[%s266 + $0x28] sm:$0xff]
        %v273 = vld [vmem:[%s266 + $0x30] sm:$0xff]
        %v274 = vld [vmem:[%s266 + $0x38] sm:$0xff]
        %v275 = vld [vmem:[%s266 + $0x40] sm:$0xff]
        %v276 = vld [vmem:[%s266 + $0x48] sm:$0xff]
        %v277 = vld [vmem:[%s266 + $0x50] sm:$0xff]
        %v278 = vld [vmem:[%s266 + $0x58] sm:$0xff]
        %v279 = vld [vmem:[%s266 + $0x60] sm:$0xff]
        %v280 = vld [vmem:[%s266 + $0x68] sm:$0xff]
        %v281 = vld [vmem:[%s266 + $0x70] sm:$0xff]
        %v282 = vld [vmem:[%s266 + $0x78] sm:$0xff]
        %s283 = scalar_lea.vmem %s2, 1
        %v284 = vld [vmem:[%s283] sm:$0x1]
        %v286 = vlaneseq
        %v287 = vshrl.u32 %v286, 7
        %v288 = vsub.s32 0, %v287
        %v289 = vrot.slane %v284, %v288
        %291 = vmatprep.subr.mxu0 0.0
        %292 = vmatpush1.msra.mxu0 %v267
        %293 = vmatprep.subr.mxu0 0.0
        %294 = vmatpush1.msra.mxu0 %v268
        %295 = vmatprep.subr.mxu0 0.0
        %296 = vmatpush1.msra.mxu0 %v269
        %297 = vmatprep.subr.mxu0 0.0
        %298 = vmatpush1.msra.mxu0 %v270
        %299 = vmatprep.subr.mxu0 0.0
        %300 = vmatpush1.msra.mxu0 %v271
        %301 = vmatprep.subr.mxu0 0.0
        %302 = vmatpush1.msra.mxu0 %v272
        %303 = vmatprep.subr.mxu0 0.0
        %304 = vmatpush1.msra.mxu0 %v273
        %305 = vmatprep.subr.mxu0 0.0
        %306 = vmatpush1.msra.mxu0 %v274
        %307 = vmatprep.subr.mxu0 0.0
        %308 = vmatpush1.msra.mxu0 %v275
        %309 = vmatprep.subr.mxu0 0.0
        %310 = vmatpush1.msra.mxu0 %v276
        %311 = vmatprep.subr.mxu0 0.0
        %312 = vmatpush1.msra.mxu0 %v277
        %313 = vmatprep.subr.mxu0 0.0
        %314 = vmatpush1.msra.mxu0 %v278
        %315 = vmatprep.subr.mxu0 0.0
        %316 = vmatpush1.msra.mxu0 %v279
        %317 = vmatprep.subr.mxu0 0.0
        %318 = vmatpush1.msra.mxu0 %v280
        %319 = vmatprep.subr.mxu0 0.0
        %320 = vmatpush1.msra.mxu0 %v281
        %321 = vmatprep.subr.mxu0 0.0
        %322 = vmatpush1.msra.mxu0 %v282
        %323 = vmatprep.subr.mxu0 0.0
        %324 = vmatpush1.msra.mxu0 0.0
        %325 = vmatprep.subr.mxu0 0.0
        %326 = vmatpush1.msra.mxu0 0.0
        %327 = vmatprep.subr.mxu0 0.0
        %328 = vmatpush1.msra.mxu0 0.0
        %329 = vmatprep.subr.mxu0 0.0
        %330 = vmatpush1.msra.mxu0 0.0
        %331 = vmatprep.subr.mxu0 0.0
        %332 = vmatpush1.msra.mxu0 0.0
        %333 = vmatprep.subr.mxu0 0.0
        %334 = vmatpush1.msra.mxu0 0.0
        %335 = vmatprep.subr.mxu0 0.0
        %336 = vmatpush1.msra.mxu0 0.0
        %337 = vmatprep.subr.mxu0 0.0
        %338 = vmatpush1.msra.mxu0 0.0
        %339 = vmatprep.subr.mxu0 0.0
        %340 = vmatpush1.msra.mxu0 0.0
        %341 = vmatprep.subr.mxu0 0.0
        %342 = vmatpush1.msra.mxu0 0.0
        %343 = vmatprep.subr.mxu0 0.0
        %344 = vmatpush1.msra.mxu0 0.0
        %345 = vmatprep.subr.mxu0 0.0
        %346 = vmatpush1.msra.mxu0 0.0
        %347 = vmatprep.subr.mxu0 0.0
        %348 = vmatpush1.msra.mxu0 0.0
        %349 = vmatprep.subr.mxu0 0.0
        %350 = vmatpush1.msra.mxu0 0.0
        %351 = vmatprep.subr.mxu0 0.0
        %352 = vmatpush1.msra.mxu0 0.0
        %353 = vmatprep.subr.mxu0 0.0
        %354 = vmatpush1.msra.mxu0 0.0
        %355 = vmatprep.mubr.f32.mxu0 0.0
        %356 = vmatmul.mubr.f32.gmra.mrb[0].mxu0 %v262
        %v357 = vpop.f32.mrb[0].mxu0
        %v358 = vadd.f32 %v289, %v357
        %v359 = vpop.f32.mrb[0].mxu0
        %360 = vmatprep.mubr.f32.mxu0 0.0
        %361 = vmatmul.mubr.f32.gmra.mrb[0].mxu0 %v263
        %v362 = vpop.f32.mrb[0].mxu0
        %v363 = vadd.f32 %v289, %v362
        %v364 = vpop.f32.mrb[0].mxu0
        %365 = vmatprep.mubr.f32.mxu0 0.0
        %366 = vmatmul.mubr.f32.gmra.mrb[0].mxu0 %v264
        %v367 = vpop.f32.mrb[0].mxu0
        %v368 = vadd.f32 %v289, %v367
        %v369 = vpop.f32.mrb[0].mxu0
        %370 = vmatprep.mubr.f32.mxu0 0.0
        %371 = vmatmul.mubr.f32.gmra.mrb[0].mxu0 %v265
        %v372 = vpop.f32.mrb[0].mxu0
        %v373 = vadd.f32 %v289, %v372
        %v374 = vpop.f32.mrb[0].mxu0
        %375 = vdwg.mxu0
        %v376 = vtanh.pop %v358
        %v377 = vtanh.pop %v363
        %v378 = vtanh.pop %v368
        %v379 = vtanh.pop %v373
        %s380 = scalar_lea.vmem [#allocation2], 256
        %v381 = vld [vmem:[%s380] sm:$0xff]
        %v382 = vld [vmem:[%s380 + $0x8] sm:$0xff]
        %v383 = vld [vmem:[%s380 + $0x10] sm:$0xff]
        %v384 = vld [vmem:[%s380 + $0x18] sm:$0xff]
        %v385 = vld [vmem:[%s380 + $0x20] sm:$0xff]
        %v386 = vld [vmem:[%s380 + $0x28] sm:$0xff]
        %v387 = vld [vmem:[%s380 + $0x30] sm:$0xff]
        %v388 = vld [vmem:[%s380 + $0x38] sm:$0xff]
        %v389 = vld [vmem:[%s380 + $0x40] sm:$0xff]
        %v390 = vld [vmem:[%s380 + $0x48] sm:$0xff]
        %v391 = vld [vmem:[%s380 + $0x50] sm:$0xff]
        %v392 = vld [vmem:[%s380 + $0x58] sm:$0xff]
        %v393 = vld [vmem:[%s380 + $0x60] sm:$0xff]
        %v394 = vld [vmem:[%s380 + $0x68] sm:$0xff]
        %v395 = vld [vmem:[%s380 + $0x70] sm:$0xff]
        %v396 = vld [vmem:[%s380 + $0x78] sm:$0xff]
        %s397 = scalar_lea.vmem %s2, 2
        %v398 = vld [vmem:[%s397] sm:$0x1]
        %v400 = vlaneseq
        %v401 = vshrl.u32 %v400, 7
        %v402 = vsub.s32 0, %v401
        %v403 = vrot.slane %v398, %v402
        %405 = vmatprep.subr.mxu0 0.0
        %406 = vmatpush1.msra.mxu0 %v381
        %407 = vmatprep.subr.mxu0 0.0
        %408 = vmatpush1.msra.mxu0 %v382
        %409 = vmatprep.subr.mxu0 0.0
        %410 = vmatpush1.msra.mxu0 %v383
        %411 = vmatprep.subr.mxu0 0.0
        %412 = vmatpush1.msra.mxu0 %v384
        %413 = vmatprep.subr.mxu0 0.0
        %414 = vmatpush1.msra.mxu0 %v385
        %415 = vmatprep.subr.mxu0 0.0
        %416 = vmatpush1.msra.mxu0 %v386
        %417 = vmatprep.subr.mxu0 0.0
        %418 = vmatpush1.msra.mxu0 %v387
        %419 = vmatprep.subr.mxu0 0.0
        %420 = vmatpush1.msra.mxu0 %v388
        %421 = vmatprep.subr.mxu0 0.0
        %422 = vmatpush1.msra.mxu0 %v389
        %423 = vmatprep.subr.mxu0 0.0
        %424 = vmatpush1.msra.mxu0 %v390
        %425 = vmatprep.subr.mxu0 0.0
        %426 = vmatpush1.msra.mxu0 %v391
        %427 = vmatprep.subr.mxu0 0.0
        %428 = vmatpush1.msra.mxu0 %v392
        %429 = vmatprep.subr.mxu0 0.0
        %430 = vmatpush1.msra.mxu0 %v393
        %431 = vmatprep.subr.mxu0 0.0
        %432 = vmatpush1.msra.mxu0 %v394
        %433 = vmatprep.subr.mxu0 0.0
        %434 = vmatpush1.msra.mxu0 %v395
        %435 = vmatprep.subr.mxu0 0.0
        %436 = vmatpush1.msra.mxu0 %v396
        %437 = vmatprep.subr.mxu0 0.0
        %438 = vmatpush1.msra.mxu0 0.0
        %439 = vmatprep.subr.mxu0 0.0
        %440 = vmatpush1.msra.mxu0 0.0
        %441 = vmatprep.subr.mxu0 0.0
        %442 = vmatpush1.msra.mxu0 0.0
        %443 = vmatprep.subr.mxu0 0.0
        %444 = vmatpush1.msra.mxu0 0.0
        %445 = vmatprep.subr.mxu0 0.0
        %446 = vmatpush1.msra.mxu0 0.0
        %447 = vmatprep.subr.mxu0 0.0
        %448 = vmatpush1.msra.mxu0 0.0
        %449 = vmatprep.subr.mxu0 0.0
        %450 = vmatpush1.msra.mxu0 0.0
        %451 = vmatprep.subr.mxu0 0.0
        %452 = vmatpush1.msra.mxu0 0.0
        %453 = vmatprep.subr.mxu0 0.0
        %454 = vmatpush1.msra.mxu0 0.0
        %455 = vmatprep.subr.mxu0 0.0
        %456 = vmatpush1.msra.mxu0 0.0
        %457 = vmatprep.subr.mxu0 0.0
        %458 = vmatpush1.msra.mxu0 0.0
        %459 = vmatprep.subr.mxu0 0.0
        %460 = vmatpush1.msra.mxu0 0.0
        %461 = vmatprep.subr.mxu0 0.0
        %462 = vmatpush1.msra.mxu0 0.0
        %463 = vmatprep.subr.mxu0 0.0
        %464 = vmatpush1.msra.mxu0 0.0
        %465 = vmatprep.subr.mxu0 0.0
        %466 = vmatpush1.msra.mxu0 0.0
        %467 = vmatprep.subr.mxu0 0.0
        %468 = vmatpush1.msra.mxu0 0.0
        %469 = vmatprep.mubr.f32.mxu0 0.0
        %470 = vmatmul.mubr.f32.gmra.mrb[0].mxu0 %v376
        %v471 = vpop.f32.mrb[0].mxu0
        %v472 = vadd.f32 %v403, %v471
        %v473 = vpop.f32.mrb[0].mxu0
        %474 = vmatprep.mubr.f32.mxu0 0.0
        %475 = vmatmul.mubr.f32.gmra.mrb[0].mxu0 %v377
        %v476 = vpop.f32.mrb[0].mxu0
        %v477 = vadd.f32 %v403, %v476
        %v478 = vpop.f32.mrb[0].mxu0
        %479 = vmatprep.mubr.f32.mxu0 0.0
        %480 = vmatmul.mubr.f32.gmra.mrb[0].mxu0 %v378
        %v481 = vpop.f32.mrb[0].mxu0
        %v482 = vadd.f32 %v403, %v481
        %v483 = vpop.f32.mrb[0].mxu0
        %484 = vmatprep.mubr.f32.mxu0 0.0
        %485 = vmatmul.mubr.f32.gmra.mrb[0].mxu0 %v379
        %v486 = vpop.f32.mrb[0].mxu0
        %v487 = vadd.f32 %v403, %v486
        %v488 = vpop.f32.mrb[0].mxu0
        %489 = vdwg.mxu0
        %v490 = vtanh.pop %v472
        %v491 = vtanh.pop %v477
        %v492 = vtanh.pop %v482
        %v493 = vtanh.pop %v487
        %s494 = scalar_lea.vmem [#allocation2], 384
        %v495 = vld [vmem:[%s494] sm:$0xff]
        %v496 = vld [vmem:[%s494 + $0x8] sm:$0xff]
        %v497 = vld [vmem:[%s494 + $0x10] sm:$0xff]
        %v498 = vld [vmem:[%s494 + $0x18] sm:$0xff]
        %v499 = vld [vmem:[%s494 + $0x20] sm:$0xff]
        %v500 = vld [vmem:[%s494 + $0x28] sm:$0xff]
        %v501 = vld [vmem:[%s494 + $0x30] sm:$0xff]
        %v502 = vld [vmem:[%s494 + $0x38] sm:$0xff]
        %v503 = vld [vmem:[%s494 + $0x40] sm:$0xff]
        %v504 = vld [vmem:[%s494 + $0x48] sm:$0xff]
        %v505 = vld [vmem:[%s494 + $0x50] sm:$0xff]
        %v506 = vld [vmem:[%s494 + $0x58] sm:$0xff]
        %v507 = vld [vmem:[%s494 + $0x60] sm:$0xff]
        %v508 = vld [vmem:[%s494 + $0x68] sm:$0xff]
        %v509 = vld [vmem:[%s494 + $0x70] sm:$0xff]
        %v510 = vld [vmem:[%s494 + $0x78] sm:$0xff]
        %s511 = scalar_lea.vmem %s2, 3
        %v512 = vld [vmem:[%s511] sm:$0x1]
        %v514 = vlaneseq
        %v515 = vshrl.u32 %v514, 7
        %v516 = vsub.s32 0, %v515
        %v517 = vrot.slane %v512, %v516
        %519 = vmatprep.subr.mxu0 0.0
        %520 = vmatpush1.msra.mxu0 %v495
        %521 = vmatprep.subr.mxu0 0.0
        %522 = vmatpush1.msra.mxu0 %v496
        %523 = vmatprep.subr.mxu0 0.0
        %524 = vmatpush1.msra.mxu0 %v497
        %525 = vmatprep.subr.mxu0 0.0
        %526 = vmatpush1.msra.mxu0 %v498
        %527 = vmatprep.subr.mxu0 0.0
        %528 = vmatpush1.msra.mxu0 %v499
        %529 = vmatprep.subr.mxu0 0.0
        %530 = vmatpush1.msra.mxu0 %v500
        %531 = vmatprep.subr.mxu0 0.0
        %532 = vmatpush1.msra.mxu0 %v501
        %533 = vmatprep.subr.mxu0 0.0
        %534 = vmatpush1.msra.mxu0 %v502
        %535 = vmatprep.subr.mxu0 0.0
        %536 = vmatpush1.msra.mxu0 %v503
        %537 = vmatprep.subr.mxu0 0.0
        %538 = vmatpush1.msra.mxu0 %v504
        %539 = vmatprep.subr.mxu0 0.0
        %540 = vmatpush1.msra.mxu0 %v505
        %541 = vmatprep.subr.mxu0 0.0
        %542 = vmatpush1.msra.mxu0 %v506
        %543 = vmatprep.subr.mxu0 0.0
        %544 = vmatpush1.msra.mxu0 %v507
        %545 = vmatprep.subr.mxu0 0.0
        %546 = vmatpush1.msra.mxu0 %v508
        %547 = vmatprep.subr.mxu0 0.0
        %548 = vmatpush1.msra.mxu0 %v509
        %549 = vmatprep.subr.mxu0 0.0
        %550 = vmatpush1.msra.mxu0 %v510
        %551 = vmatprep.subr.mxu0 0.0
        %552 = vmatpush1.msra.mxu0 0.0
        %553 = vmatprep.subr.mxu0 0.0
        %554 = vmatpush1.msra.mxu0 0.0
        %555 = vmatprep.subr.mxu0 0.0
        %556 = vmatpush1.msra.mxu0 0.0
        %557 = vmatprep.subr.mxu0 0.0
        %558 = vmatpush1.msra.mxu0 0.0
        %559 = vmatprep.subr.mxu0 0.0
        %560 = vmatpush1.msra.mxu0 0.0
        %561 = vmatprep.subr.mxu0 0.0
        %562 = vmatpush1.msra.mxu0 0.0
        %563 = vmatprep.subr.mxu0 0.0
        %564 = vmatpush1.msra.mxu0 0.0
        %565 = vmatprep.subr.mxu0 0.0
        %566 = vmatpush1.msra.mxu0 0.0
        %567 = vmatprep.subr.mxu0 0.0
        %568 = vmatpush1.msra.mxu0 0.0
        %569 = vmatprep.subr.mxu0 0.0
        %570 = vmatpush1.msra.mxu0 0.0
        %571 = vmatprep.subr.mxu0 0.0
        %572 = vmatpush1.msra.mxu0 0.0
        %573 = vmatprep.subr.mxu0 0.0
        %574 = vmatpush1.msra.mxu0 0.0
        %575 = vmatprep.subr.mxu0 0.0
        %576 = vmatpush1.msra.mxu0 0.0
        %577 = vmatprep.subr.mxu0 0.0
        %578 = vmatpush1.msra.mxu0 0.0
        %579 = vmatprep.subr.mxu0 0.0
        %580 = vmatpush1.msra.mxu0 0.0
        %581 = vmatprep.subr.mxu0 0.0
        %582 = vmatpush1.msra.mxu0 0.0
        %583 = vmatprep.mubr.f32.mxu0 0.0
        %584 = vmatmul.mubr.f32.gmra.mrb[0].mxu0 %v490
        %v585 = vpop.f32.mrb[0].mxu0
        %v586 = vadd.f32 %v517, %v585
        %v587 = vpop.f32.mrb[0].mxu0
        %588 = vmatprep.mubr.f32.mxu0 0.0
        %589 = vmatmul.mubr.f32.gmra.mrb[0].mxu0 %v491
        %v590 = vpop.f32.mrb[0].mxu0
        %v591 = vadd.f32 %v517, %v590
        %v592 = vpop.f32.mrb[0].mxu0
        %593 = vmatprep.mubr.f32.mxu0 0.0
        %594 = vmatmul.mubr.f32.gmra.mrb[0].mxu0 %v492
        %v595 = vpop.f32.mrb[0].mxu0
        %v596 = vadd.f32 %v517, %v595
        %v597 = vpop.f32.mrb[0].mxu0
        %598 = vmatprep.mubr.f32.mxu0 0.0
        %599 = vmatmul.mubr.f32.gmra.mrb[0].mxu0 %v493
        %v600 = vpop.f32.mrb[0].mxu0
        %v601 = vadd.f32 %v517, %v600
        %v602 = vpop.f32.mrb[0].mxu0
        %603 = vdwg.mxu0
        %vm604 = vcmask 7168
        %605 = vst.msk [vmem:[%s187] sm:$0xff] %vm604, %v586
        %606 = vst.msk [vmem:[%s187 + $0x8] sm:$0xff] %vm604, %v591
        %607 = vst.msk [vmem:[%s187 + $0x10] sm:$0xff] %vm604, %v596
        %608 = vst.msk [vmem:[%s187 + $0x18] sm:$0xff] %vm604, %v601
        %s609 = smul.u32 4, %s15
        %p610 = scmp.lt.s32.totalorder %s609, 7
        %s611 = scalar_select %p610, %s609, 7
        %s612 = smul.addr %s611, 8
        %s613 = scalar_lea.vmem %s3, %s612
        // Predicated region
        $region37: #{tpu_custom_call.1} parent=31 // pred_check
          %p614 = pneg %p101
        $region38: #{tpu_custom_call.1} parent=31 // pred_check_branch
          %616 = sbr.rel (%p614) target = $region40
        $region39: #{tpu_custom_call.1} parent=31 // pred_region
          %s617 = smul.u32 4, %s15
        $region40: #{tpu_custom_call.1} parent=31 // pred_fallthru
          _
      $region32: #{tpu_custom_call.1} parent=5 // pred_fallthru
        _
      %p618 = scmp.le.s32.totalorder 2, %s10
      // Predicated region
      $region41: #{tpu_custom_call.1} parent=5 // pred_check
        %p619 = pneg %p618
      $region42: #{tpu_custom_call.1} parent=5 // pred_check_branch
        %621 = sbr.rel (%p619) target = $region44
      $region43: #{tpu_custom_call.1} parent=5 // pred_region
        %s622 = ssub.s32 %s10, 2
        // Predicated region
        $region45: #{tpu_custom_call.1} parent=43 // pred_check
          %p623 = pneg %p107
        $region46: #{tpu_custom_call.1} parent=43 // pred_check_branch
          %625 = sbr.rel (%p623) target = $region48
        $region47: #{tpu_custom_call.1} parent=43 // pred_region
          %s626 = smul.u32 4, %s16
          %p627 = scmp.lt.s32.totalorder %s626, 7
          %s628 = scalar_select %p627, %s626, 7
          %s629 = smul.addr %s628, 8
          %s630 = scalar_lea.vmem %s3, %s629
        $region48: #{tpu_custom_call.1} parent=43 // pred_fallthru
          _
      $region44: #{tpu_custom_call.1} parent=5 // pred_fallthru
        _
    $region6: #{tpu_custom_call.1} parent=1 // loop_footer
      %s14 = sadd.s32 1, %s10
    $region7: #{tpu_custom_call.1} parent=1 // loop_footer_branch
      %9 = sbr.rel target = $region3
    $region8: #{tpu_custom_call.1} parent=1 // loop_exit
      _
    %631 = vsyncpa [#allocation3], 1
    %s632 = scalar_lea.sflag [#allocation3], 1
    %633 = vsyncpa %s632, 1

</llo_original>
